<compile_context>
chip_gen: v7x
topology: tpu7x:2x2x1
jax: 0.10.0
libtpu: 0.0.40
codegen_flags: <defaults>
</compile_context>

<pallas_src>
import jax
import jax.numpy as jnp
import numpy as np
from jax.experimental import pallas as pl
from jax.experimental.pallas import tpu as pltpu


# --------------------------------------------------------------------------
# Pallas kernel
# --------------------------------------------------------------------------
def _apply_coeffs_kernel(coeff_ref, inp_ref, out_ref):
    # coeff_ref: (12, S, 128)   inp_ref: (3, S, 128)   out_ref: (3, S, 128)
    # Channels indexed on the leading (untiled) axis -> dense (S, 128) slabs.
    x0 = inp_ref[0].astype(jnp.float32)
    x1 = inp_ref[1].astype(jnp.float32)
    x2 = inp_ref[2].astype(jnp.float32)
    for oc in range(3):  # R, G, B (static unroll)
        c0 = coeff_ref[4 * oc + 0].astype(jnp.float32)
        c1 = coeff_ref[4 * oc + 1].astype(jnp.float32)
        c2 = coeff_ref[4 * oc + 2].astype(jnp.float32)
        bias = coeff_ref[4 * oc + 3].astype(jnp.float32)
        out_ref[oc] = (bias + c0 * x0 + c1 * x1 + c2 * x2).astype(out_ref.dtype)


# --------------------------------------------------------------------------
# Wrapper
# --------------------------------------------------------------------------
def apply_coeffs(coeff, inp, *, lane_tile=65536):
    """coeff: (bs, 12, h, w), inp: (bs, 3, h, w) -> (bs, 3, h, w) (NCHW)."""
    bs, cc, h, w = coeff.shape
    assert cc == 12 and inp.shape == (bs, 3, h, w), (coeff.shape, inp.shape)
    hw = h * w
    out_dtype = jnp.result_type(coeff.dtype, inp.dtype)

    # Lane-dense layout: spatial -> (S_total rows, 128 lanes).
    hw_p = pl.cdiv(hw, 128) * 128
    coeff3 = coeff.reshape(bs, 12, hw)
    inp3 = inp.reshape(bs, 3, hw)
    if hw_p != hw:
        # Rare case (hw not a multiple of 128): one small pad copy.
        # Typical resolutions (256x256, 1920x1080, ...) take the no-copy path.
        coeff3 = jnp.pad(coeff3, ((0, 0), (0, 0), (0, hw_p - hw)))
        inp3 = jnp.pad(inp3, ((0, 0), (0, 0), (0, hw_p - hw)))
    s_total = hw_p // 128
    coeff4 = coeff3.reshape(bs, 12, s_total, 128)
    inp4 = inp3.reshape(bs, 3, s_total, 128)

    # Tile rows: target ~65536 lanes/step (>= 1-2 MB HBM traffic per step).
    s_t = min(max(1, lane_tile // 128), s_total)
    if bs == 1:
        # Keep >= 2 spatial grid steps so both v7x TensorCores get work.
        s_t = min(s_t, pl.cdiv(s_total, 2))
    if s_t < s_total:
        # (8,128) rule: second-to-last block dim must be a multiple of 8
        # unless it spans the full axis.
        s_t = min(max(8, (s_t // 8) * 8), s_total)
    n_s = pl.cdiv(s_total, s_t)  # trailing partial block is masked by Pallas

    out = pl.pallas_call(
        _apply_coeffs_kernel,
        out_shape=jax.ShapeDtypeStruct((bs, 3, s_total, 128), out_dtype),
        grid=(bs, n_s),
        in_specs=[
            pl.BlockSpec((None, 12, s_t, 128), lambda b, s: (b, 0, s, 0)),
            pl.BlockSpec((None, 3, s_t, 128), lambda b, s: (b, 0, s, 0)),
        ],
        out_specs=pl.BlockSpec((None, 3, s_t, 128), lambda b, s: (b, 0, s, 0)),
        compiler_params=pltpu.CompilerParams(
            dimension_semantics=("parallel", "parallel"),
            # ~9.4 MB of double-buffered blocks at the default tile; 48 MiB
            # allows larger user tiles while staying inside v7x's 64 MiB VMEM.
            vmem_limit_bytes=48 * 1024 * 1024,
        ),
    )(coeff4, inp4)

    out = out.reshape(bs, 3, hw_p)
    if hw_p != hw:
        out = out[:, :, :hw]
    return out.reshape(bs, 3, h, w)


# --------------------------------------------------------------------------
# main
# --------------------------------------------------------------------------
if __name__ == "__main__":
    bs, h, w = 2, 16, 16

    key = jax.random.PRNGKey(0)
    kc, kx = jax.random.split(key, 2)
    coeff = jax.random.normal(kc, (bs, 12, h, w), jnp.float32)
    inp = jax.random.normal(kx, (bs, 3, h, w), jnp.float32)

    fwd = jax.jit(apply_coeffs)
    out = jax.block_until_ready(fwd(coeff, inp))

    # Pure-JAX reference (mirrors the PyTorch module exactly).
    ref_R = jnp.sum(inp * coeff[:, 0:3], axis=1, keepdims=True) + coeff[:, 3:4]
    ref_G = jnp.sum(inp * coeff[:, 4:7], axis=1, keepdims=True) + coeff[:, 7:8]
    ref_B = jnp.sum(inp * coeff[:, 8:11], axis=1, keepdims=True) + coeff[:, 11:12]
    ref = jnp.concatenate([ref_R, ref_G, ref_B], axis=1)

    assert out.shape == (bs, 3, h, w), out.shape
    np.testing.assert_allclose(np.asarray(out), np.asarray(ref), rtol=1e-5, atol=1e-5)

    print("KERNEL_OK")
</pallas_src>

<mosaic_0001>
module attributes {stable_mosaic.version = 11 : i64} {
  func.func @_apply_coeffs_kernel(%arg0: i32, %arg1: i32, %arg2: memref<1x12x2x128xf32, #tpu.memory_space<vmem>>, %arg3: memref<1x3x2x128xf32, #tpu.memory_space<vmem>>, %arg4: memref<1x3x2x128xf32, #tpu.memory_space<vmem>>) attributes {dimension_semantics = [#tpu.dimension_semantics<parallel>, #tpu.dimension_semantics<parallel>], iteration_bounds = array<i64: 2, 1>, scalar_prefetch = 0 : i64, scratch_operands = 0 : i64, tpu.core_type = #tpu.core_type<tc>, window_params = [{transform_indices = @transform_0, window_bounds = array<i64: 1, 12, 2, 128>}, {transform_indices = @transform_1, window_bounds = array<i64: 1, 3, 2, 128>}, {transform_indices = @transform_2, window_bounds = array<i64: 1, 3, 2, 128>}]} {
    %c0 = arith.constant 0 : index
    %c0_0 = arith.constant 0 : index
    %c0_1 = arith.constant 0 : index
    %c0_2 = arith.constant 0 : index
    %0 = vector.load %arg3[%c0, %c0_0, %c0_1, %c0_2] : memref<1x3x2x128xf32, #tpu.memory_space<vmem>>, vector<1x1x2x128xf32>
    %1 = vector.shape_cast %0 : vector<1x1x2x128xf32> to vector<2x128xf32>
    %c0_3 = arith.constant 0 : index
    %c1 = arith.constant 1 : index
    %c0_4 = arith.constant 0 : index
    %c0_5 = arith.constant 0 : index
    %2 = vector.load %arg3[%c0_3, %c1, %c0_4, %c0_5] : memref<1x3x2x128xf32, #tpu.memory_space<vmem>>, vector<1x1x2x128xf32>
    %3 = vector.shape_cast %2 : vector<1x1x2x128xf32> to vector<2x128xf32>
    %c0_6 = arith.constant 0 : index
    %c2 = arith.constant 2 : index
    %c0_7 = arith.constant 0 : index
    %c0_8 = arith.constant 0 : index
    %4 = vector.load %arg3[%c0_6, %c2, %c0_7, %c0_8] : memref<1x3x2x128xf32, #tpu.memory_space<vmem>>, vector<1x1x2x128xf32>
    %5 = vector.shape_cast %4 : vector<1x1x2x128xf32> to vector<2x128xf32>
    %c0_9 = arith.constant 0 : index
    %c0_10 = arith.constant 0 : index
    %c0_11 = arith.constant 0 : index
    %c0_12 = arith.constant 0 : index
    %6 = vector.load %arg2[%c0_9, %c0_10, %c0_11, %c0_12] : memref<1x12x2x128xf32, #tpu.memory_space<vmem>>, vector<1x1x2x128xf32>
    %7 = vector.shape_cast %6 : vector<1x1x2x128xf32> to vector<2x128xf32>
    %c0_13 = arith.constant 0 : index
    %c1_14 = arith.constant 1 : index
    %c0_15 = arith.constant 0 : index
    %c0_16 = arith.constant 0 : index
    %8 = vector.load %arg2[%c0_13, %c1_14, %c0_15, %c0_16] : memref<1x12x2x128xf32, #tpu.memory_space<vmem>>, vector<1x1x2x128xf32>
    %9 = vector.shape_cast %8 : vector<1x1x2x128xf32> to vector<2x128xf32>
    %c0_17 = arith.constant 0 : index
    %c2_18 = arith.constant 2 : index
    %c0_19 = arith.constant 0 : index
    %c0_20 = arith.constant 0 : index
    %10 = vector.load %arg2[%c0_17, %c2_18, %c0_19, %c0_20] : memref<1x12x2x128xf32, #tpu.memory_space<vmem>>, vector<1x1x2x128xf32>
    %11 = vector.shape_cast %10 : vector<1x1x2x128xf32> to vector<2x128xf32>
    %c0_21 = arith.constant 0 : index
    %c3 = arith.constant 3 : index
    %c0_22 = arith.constant 0 : index
    %c0_23 = arith.constant 0 : index
    %12 = vector.load %arg2[%c0_21, %c3, %c0_22, %c0_23] : memref<1x12x2x128xf32, #tpu.memory_space<vmem>>, vector<1x1x2x128xf32>
    %13 = vector.shape_cast %12 : vector<1x1x2x128xf32> to vector<2x128xf32>
    %14 = arith.mulf %7, %1 : vector<2x128xf32>
    %15 = arith.addf %13, %14 : vector<2x128xf32>
    %16 = arith.mulf %9, %3 : vector<2x128xf32>
    %17 = arith.addf %15, %16 : vector<2x128xf32>
    %18 = arith.mulf %11, %5 : vector<2x128xf32>
    %19 = arith.addf %17, %18 : vector<2x128xf32>
    %c0_24 = arith.constant 0 : index
    %c0_25 = arith.constant 0 : index
    %c0_26 = arith.constant 0 : index
    %c0_27 = arith.constant 0 : index
    %20 = vector.load %arg4[%c0_24, %c0_25, %c0_26, %c0_27] : memref<1x3x2x128xf32, #tpu.memory_space<vmem>>, vector<1x1x2x128xf32>
    %21 = vector.shape_cast %20 : vector<1x1x2x128xf32> to vector<2x128xf32>
    %22 = vector.shape_cast %19 : vector<2x128xf32> to vector<1x1x2x128xf32>
    tpu.vector_store %arg4[%c0_24, %c0_25, %c0_26, %c0_27], %22 {strides = array<i32>} : memref<1x3x2x128xf32, #tpu.memory_space<vmem>>, vector<1x1x2x128xf32>,
    %c0_28 = arith.constant 0 : index
    %c4 = arith.constant 4 : index
    %c0_29 = arith.constant 0 : index
    %c0_30 = arith.constant 0 : index
    %23 = vector.load %arg2[%c0_28, %c4, %c0_29, %c0_30] : memref<1x12x2x128xf32, #tpu.memory_space<vmem>>, vector<1x1x2x128xf32>
    %24 = vector.shape_cast %23 : vector<1x1x2x128xf32> to vector<2x128xf32>
    %c0_31 = arith.constant 0 : index
    %c5 = arith.constant 5 : index
    %c0_32 = arith.constant 0 : index
    %c0_33 = arith.constant 0 : index
    %25 = vector.load %arg2[%c0_31, %c5, %c0_32, %c0_33] : memref<1x12x2x128xf32, #tpu.memory_space<vmem>>, vector<1x1x2x128xf32>
    %26 = vector.shape_cast %25 : vector<1x1x2x128xf32> to vector<2x128xf32>
    %c0_34 = arith.constant 0 : index
    %c6 = arith.constant 6 : index
    %c0_35 = arith.constant 0 : index
    %c0_36 = arith.constant 0 : index
    %27 = vector.load %arg2[%c0_34, %c6, %c0_35, %c0_36] : memref<1x12x2x128xf32, #tpu.memory_space<vmem>>, vector<1x1x2x128xf32>
    %28 = vector.shape_cast %27 : vector<1x1x2x128xf32> to vector<2x128xf32>
    %c0_37 = arith.constant 0 : index
    %c7 = arith.constant 7 : index
    %c0_38 = arith.constant 0 : index
    %c0_39 = arith.constant 0 : index
    %29 = vector.load %arg2[%c0_37, %c7, %c0_38, %c0_39] : memref<1x12x2x128xf32, #tpu.memory_space<vmem>>, vector<1x1x2x128xf32>
    %30 = vector.shape_cast %29 : vector<1x1x2x128xf32> to vector<2x128xf32>
    %31 = arith.mulf %24, %1 : vector<2x128xf32>
    %32 = arith.addf %30, %31 : vector<2x128xf32>
    %33 = arith.mulf %26, %3 : vector<2x128xf32>
    %34 = arith.addf %32, %33 : vector<2x128xf32>
    %35 = arith.mulf %28, %5 : vector<2x128xf32>
    %36 = arith.addf %34, %35 : vector<2x128xf32>
    %c0_40 = arith.constant 0 : index
    %c1_41 = arith.constant 1 : index
    %c0_42 = arith.constant 0 : index
    %c0_43 = arith.constant 0 : index
    %37 = vector.load %arg4[%c0_40, %c1_41, %c0_42, %c0_43] : memref<1x3x2x128xf32, #tpu.memory_space<vmem>>, vector<1x1x2x128xf32>
    %38 = vector.shape_cast %37 : vector<1x1x2x128xf32> to vector<2x128xf32>
    %39 = vector.shape_cast %36 : vector<2x128xf32> to vector<1x1x2x128xf32>
    tpu.vector_store %arg4[%c0_40, %c1_41, %c0_42, %c0_43], %39 {strides = array<i32>} : memref<1x3x2x128xf32, #tpu.memory_space<vmem>>, vector<1x1x2x128xf32>,
    %c0_44 = arith.constant 0 : index
    %c8 = arith.constant 8 : index
    %c0_45 = arith.constant 0 : index
    %c0_46 = arith.constant 0 : index
    %40 = vector.load %arg2[%c0_44, %c8, %c0_45, %c0_46] : memref<1x12x2x128xf32, #tpu.memory_space<vmem>>, vector<1x1x2x128xf32>
    %41 = vector.shape_cast %40 : vector<1x1x2x128xf32> to vector<2x128xf32>
    %c0_47 = arith.constant 0 : index
    %c9 = arith.constant 9 : index
    %c0_48 = arith.constant 0 : index
    %c0_49 = arith.constant 0 : index
    %42 = vector.load %arg2[%c0_47, %c9, %c0_48, %c0_49] : memref<1x12x2x128xf32, #tpu.memory_space<vmem>>, vector<1x1x2x128xf32>
    %43 = vector.shape_cast %42 : vector<1x1x2x128xf32> to vector<2x128xf32>
    %c0_50 = arith.constant 0 : index
    %c10 = arith.constant 10 : index
    %c0_51 = arith.constant 0 : index
    %c0_52 = arith.constant 0 : index
    %44 = vector.load %arg2[%c0_50, %c10, %c0_51, %c0_52] : memref<1x12x2x128xf32, #tpu.memory_space<vmem>>, vector<1x1x2x128xf32>
    %45 = vector.shape_cast %44 : vector<1x1x2x128xf32> to vector<2x128xf32>
    %c0_53 = arith.constant 0 : index
    %c11 = arith.constant 11 : index
    %c0_54 = arith.constant 0 : index
    %c0_55 = arith.constant 0 : index
    %46 = vector.load %arg2[%c0_53, %c11, %c0_54, %c0_55] : memref<1x12x2x128xf32, #tpu.memory_space<vmem>>, vector<1x1x2x128xf32>
    %47 = vector.shape_cast %46 : vector<1x1x2x128xf32> to vector<2x128xf32>
    %48 = arith.mulf %41, %1 : vector<2x128xf32>
    %49 = arith.addf %47, %48 : vector<2x128xf32>
    %50 = arith.mulf %43, %3 : vector<2x128xf32>
    %51 = arith.addf %49, %50 : vector<2x128xf32>
    %52 = arith.mulf %45, %5 : vector<2x128xf32>
    %53 = arith.addf %51, %52 : vector<2x128xf32>
    %c0_56 = arith.constant 0 : index
    %c2_57 = arith.constant 2 : index
    %c0_58 = arith.constant 0 : index
    %c0_59 = arith.constant 0 : index
    %54 = vector.load %arg4[%c0_56, %c2_57, %c0_58, %c0_59] : memref<1x3x2x128xf32, #tpu.memory_space<vmem>>, vector<1x1x2x128xf32>
    %55 = vector.shape_cast %54 : vector<1x1x2x128xf32> to vector<2x128xf32>
    %56 = vector.shape_cast %53 : vector<2x128xf32> to vector<1x1x2x128xf32>
    tpu.vector_store %arg4[%c0_56, %c2_57, %c0_58, %c0_59], %56 {strides = array<i32>} : memref<1x3x2x128xf32, #tpu.memory_space<vmem>>, vector<1x1x2x128xf32>,
    return
  }
  func.func @transform_0(%arg0: i32, %arg1: i32) -> (i32, i32, i32, i32) {
    %c0_i32 = arith.constant 0 : i32
    %c0_i32_0 = arith.constant 0 : i32
    %c0_i32_1 = arith.constant 0 : i32
    return %arg0, %c0_i32, %arg1, %c0_i32_0 : i32, i32, i32, i32
  }
  func.func @transform_1(%arg0: i32, %arg1: i32) -> (i32, i32, i32, i32) {
    %c0_i32 = arith.constant 0 : i32
    %c0_i32_0 = arith.constant 0 : i32
    %c0_i32_1 = arith.constant 0 : i32
    return %arg0, %c0_i32, %arg1, %c0_i32_0 : i32, i32, i32, i32
  }
  func.func @transform_2(%arg0: i32, %arg1: i32) -> (i32, i32, i32, i32) {
    %c0_i32 = arith.constant 0 : i32
    %c0_i32_0 = arith.constant 0 : i32
    %c0_i32_1 = arith.constant 0 : i32
    return %arg0, %c0_i32, %arg1, %c0_i32_0 : i32, i32, i32, i32
  }
}

</mosaic_0001>

<llo_original>
// kernel: apply_coeffs.1
$region0: #{apply_coeffs.1}
  #allocation0 [shape = 'u32[]', space=smem, size = 0x4, offset = 0x4, fixed_abs, tag = 'smem constant byte address 0x4 - core index']
  #allocation1 [shape = 'u32[144,128]{1,0:T(1,128)}', space=vmem, size = 0x12000, scoped, tag = 'internal scratch']
  %s0 = inlined_call_operand.vmem [shape: f32[2,12,2,128], index: 0, kind: input, shape index: {}]
  %s1 = inlined_call_operand.vmem [shape: f32[2,3,2,128], index: 1, kind: input, shape index: {}]
  %s2 = inlined_call_operand.vmem [shape: f32[2,3,2,128], index: 2, kind: output, shape index: {}]
  %s3 = sld [smem:[#allocation0]]
  $region41: #{apply_coeffs.1} parent=0
    _
  %s5 = ssub.s32 1, %s3
  %s6 = scalar_select 0, %s5, %s3
  loop: start=0, step=1, limit=4
  $region2: #{apply_coeffs.1} parent=0 // loop_pre_header
    _
  $region3: #{apply_coeffs.1} parent=0 // loop_header
    %s8 = sphi 0, %s12
    %p9 = scmp.ge.s32.totalorder %s8, 4
    %s15 = sphi 0, %s27
    %s16 = sphi 0, %s23
    %s17 = sphi 0, %s15
    %s18 = sphi 0, %s16
    %s19 = sphi 0, %s17
    %s20 = sphi 0, %s18
    %s32 = sphi 0, %s34
    %s35 = sphi 0, %s32
    %s36 = sphi 0, %s35
    %s52 = sphi 0, %s36
    %s60 = sphi 0, %s62
    %s63 = sphi 0, %s60
    %s64 = sphi 0, %s63
    %s80 = sphi 0, %s64
    %s88 = sphi 0, %s90
    %s91 = sphi 0, %s88
    %s92 = sphi 0, %s91
    %s108 = sphi 0, %s92
  $region4: #{apply_coeffs.1} parent=0 // loop_header_branch
    %11 = sbr.rel (%p9) target = $region8
  $region5: #{apply_coeffs.1} parent=0 // loop_body
    %s13 = ssub.s32 %s8, 1
    %s14 = ssub.s32 %s8, 2
    %s21 = sadd.s32 1, %s16
    %p22 = scmp.ge.s32.totalorder %s21, 1
    %s23 = scalar_select %p22, 0, %s21
    %s24 = sadd.s32 1, %s15
    %s25 = scalar_select %p22, %s24, %s15
    %p26 = scmp.ge.s32.totalorder %s25, 2
    %s27 = scalar_select %p26, 0, %s25
    %s28 = ssub.s32 %s15, %s27
    %s29 = ssub.s32 %s16, %s23
    %s30 = sor.u32 %s28, %s29
    %p31 = scmp.eq.s32.totalorder %s30, 0
    %s33 = sadd.s32 %s32, 1
    %s34 = scalar_select %p31, %s32, %s33
    %p37 = pneg %p31
    %p38 = scmp.eq.s32.totalorder %s8, 1
    %p39 = por %p37, %p38
    %p40 = scmp.ne.s32.totalorder %s32, %s35
    %p41 = scmp.eq.s32.totalorder %s8, 0
    %p42 = por %p40, %p41
    %p43 = scmp.ne.s32.totalorder %s32, %s35
    %p44 = scmp.eq.s32.totalorder %s13, 1
    %p45 = por %p43, %p44
    %p46 = scmp.ne.s32.totalorder %s35, %s36
    %p47 = scmp.eq.s32.totalorder %s13, 0
    %p48 = por %p46, %p47
    %p49 = scmp.ne.s32.totalorder %s35, %s36
    %p50 = scmp.eq.s32.totalorder %s14, 1
    %p51 = por %p49, %p50
    %p53 = scmp.ne.s32.totalorder %s36, %s52
    %p54 = scmp.eq.s32.totalorder %s14, 0
    %p55 = por %p53, %p54
    %s56 = ssub.s32 %s15, %s27
    %s57 = ssub.s32 %s16, %s23
    %s58 = sor.u32 %s56, %s57
    %p59 = scmp.eq.s32.totalorder %s58, 0
    %s61 = sadd.s32 %s60, 1
    %s62 = scalar_select %p59, %s60, %s61
    %p65 = pneg %p59
    %p66 = scmp.eq.s32.totalorder %s8, 1
    %p67 = por %p65, %p66
    %p68 = scmp.ne.s32.totalorder %s60, %s63
    %p69 = scmp.eq.s32.totalorder %s8, 0
    %p70 = por %p68, %p69
    %p71 = scmp.ne.s32.totalorder %s60, %s63
    %p72 = scmp.eq.s32.totalorder %s13, 1
    %p73 = por %p71, %p72
    %p74 = scmp.ne.s32.totalorder %s63, %s64
    %p75 = scmp.eq.s32.totalorder %s13, 0
    %p76 = por %p74, %p75
    %p77 = scmp.ne.s32.totalorder %s63, %s64
    %p78 = scmp.eq.s32.totalorder %s14, 1
    %p79 = por %p77, %p78
    %p81 = scmp.ne.s32.totalorder %s64, %s80
    %p82 = scmp.eq.s32.totalorder %s14, 0
    %p83 = por %p81, %p82
    %s84 = ssub.s32 %s15, %s27
    %s85 = ssub.s32 %s16, %s23
    %s86 = sor.u32 %s84, %s85
    %p87 = scmp.eq.s32.totalorder %s86, 0
    %s89 = sadd.s32 %s88, 1
    %s90 = scalar_select %p87, %s88, %s89
    %p93 = pneg %p87
    %p94 = scmp.eq.s32.totalorder %s8, 1
    %p95 = por %p93, %p94
    %p96 = scmp.ne.s32.totalorder %s88, %s91
    %p97 = scmp.eq.s32.totalorder %s8, 0
    %p98 = por %p96, %p97
    %p99 = scmp.ne.s32.totalorder %s88, %s91
    %p100 = scmp.eq.s32.totalorder %s13, 1
    %p101 = por %p99, %p100
    %p102 = scmp.ne.s32.totalorder %s91, %s92
    %p103 = scmp.eq.s32.totalorder %s13, 0
    %p104 = por %p102, %p103
    %p105 = scmp.ne.s32.totalorder %s91, %s92
    %p106 = scmp.eq.s32.totalorder %s14, 1
    %p107 = por %p105, %p106
    %p109 = scmp.ne.s32.totalorder %s92, %s108
    %p110 = scmp.eq.s32.totalorder %s14, 0
    %p111 = por %p109, %p110
    %p112 = scmp.le.s32.totalorder 1, %s8
    %p113 = scmp.lt.s32.totalorder %s8, 3
    %p114 = pnand %p112, %p113
    %p115 = pneg %p114
    // Predicated region
    $region9: #{apply_coeffs.1} parent=5 // pred_check
      _
    $region10: #{apply_coeffs.1} parent=5 // pred_check_branch
      %117 = sbr.rel (%p114) target = $region12
    $region11: #{apply_coeffs.1} parent=5 // pred_region
      %s118 = ssub.s32 %s8, 1
    $region12: #{apply_coeffs.1} parent=5 // pred_fallthru
      _
    %p119 = scmp.lt.s32.totalorder %s8, 2
    // Predicated region
    $region13: #{apply_coeffs.1} parent=5 // pred_check
      %p120 = pneg %p119
    $region14: #{apply_coeffs.1} parent=5 // pred_check_branch
      %122 = sbr.rel (%p120) target = $region16
    $region15: #{apply_coeffs.1} parent=5 // pred_region
      // Predicated region
      $region17: #{apply_coeffs.1} parent=15 // pred_check
        %p123 = pneg %p42
      $region18: #{apply_coeffs.1} parent=15 // pred_check_branch
        %125 = sbr.rel (%p123) target = $region20
      $region19: #{apply_coeffs.1} parent=15 // pred_region
        %p126 = scmp.lt.s32.totalorder %s15, 1
        %s127 = scalar_select %p126, %s15, 1
        %p128 = scmp.lt.s32.totalorder %s16, 0
        %s129 = scalar_select %p128, %s16, 0
        %s130 = smul.addr %s127, 12
        %s131 = sadd.s32 %s129, %s130
        %s132 = smul.addr %s131, 2
        %s133 = scalar_lea.vmem %s0, %s132
      $region20: #{apply_coeffs.1} parent=15 // pred_fallthru
        _
      // Predicated region
      $region21: #{apply_coeffs.1} parent=15 // pred_check
        %p134 = pneg %p70
      $region22: #{apply_coeffs.1} parent=15 // pred_check_branch
        %136 = sbr.rel (%p134) target = $region24
      $region23: #{apply_coeffs.1} parent=15 // pred_region
        %p137 = scmp.lt.s32.totalorder %s15, 1
        %s138 = scalar_select %p137, %s15, 1
        %p139 = scmp.lt.s32.totalorder %s16, 0
        %s140 = scalar_select %p139, %s16, 0
        %s141 = smul.addr %s138, 3
        %s142 = sadd.s32 %s140, %s141
        %s143 = smul.addr %s142, 2
        %s144 = scalar_lea.vmem %s1, %s143
      $region24: #{apply_coeffs.1} parent=15 // pred_fallthru
        _
    $region16: #{apply_coeffs.1} parent=5 // pred_fallthru
      _
    %p145 = scmp.le.s32.totalorder 1, %s8
    %p146 = scmp.lt.s32.totalorder %s8, 3
    %p147 = pnand %p145, %p146
    %p148 = pneg %p147
    // Predicated region
    $region25: #{apply_coeffs.1} parent=5 // pred_check
      _
    $region26: #{apply_coeffs.1} parent=5 // pred_check_branch
      %150 = sbr.rel (%p147) target = $region28
    $region27: #{apply_coeffs.1} parent=5 // pred_region
      %s151 = ssub.s32 %s8, 1
      %p152 = scmp.lt.s32.totalorder %s17, 1
      %s153 = scalar_select %p152, %s17, 1
      %p154 = scmp.lt.s32.totalorder %s18, 0
      %s155 = scalar_select %p154, %s18, 0
      %s156 = smul.addr %s153, 12
      %s157 = sadd.s32 %s155, %s156
      %s158 = smul.addr %s157, 2
      %s159 = scalar_lea.vmem %s0, %s158
      %p160 = pneg %p48
      %p161 = pneg %p45
      %p162 = scmp.lt.s32.totalorder %s17, 1
      %s163 = scalar_select %p162, %s17, 1
      %p164 = scmp.lt.s32.totalorder %s18, 0
      %s165 = scalar_select %p164, %s18, 0
      %s166 = smul.addr %s163, 3
      %s167 = sadd.s32 %s165, %s166
      %s168 = smul.addr %s167, 2
      %s169 = scalar_lea.vmem %s1, %s168
      %p170 = pneg %p76
      %p171 = pneg %p73
      %p172 = pneg %p104
      %p173 = pneg %p101
      %p174 = scmp.lt.s32.totalorder %s17, 1
      %s175 = scalar_select %p174, %s17, 1
      %p176 = scmp.lt.s32.totalorder %s18, 0
      %s177 = scalar_select %p176, %s18, 0
      %s178 = smul.addr %s175, 3
      %s179 = sadd.s32 %s177, %s178
      %s180 = smul.addr %s179, 2
      %s181 = scalar_lea.vmem %s2, %s180
      %p182 = scmp.lt.s32.totalorder %s17, 1
      %s183 = scalar_select %p182, %s17, 1
      %p184 = scmp.lt.s32.totalorder %s18, 0
      %s185 = scalar_select %p184, %s18, 0
      %s186 = smul.addr %s183, 12
      %s187 = sadd.s32 %s185, %s186
      %s188 = smul.addr %s187, 2
      %s189 = scalar_lea.vmem %s0, %s188
      %p190 = scmp.lt.s32.totalorder %s17, 1
      %s191 = scalar_select %p190, %s17, 1
      %p192 = scmp.lt.s32.totalorder %s18, 0
      %s193 = scalar_select %p192, %s18, 0
      %s194 = smul.addr %s191, 3
      %s195 = sadd.s32 %s193, %s194
      %s196 = smul.addr %s195, 2
      %s197 = scalar_lea.vmem %s1, %s196
      %p198 = scmp.lt.s32.totalorder %s17, 1
      %s199 = scalar_select %p198, %s17, 1
      %p200 = scmp.lt.s32.totalorder %s18, 0
      %s201 = scalar_select %p200, %s18, 0
      %s202 = smul.addr %s199, 3
      %s203 = sadd.s32 %s201, %s202
      %s204 = smul.addr %s203, 2
      %s205 = scalar_lea.vmem %s2, %s204
      %v206 = vld [vmem:[%s197] sm:$0x3]
      %s207 = scalar_lea.vmem %s197, 2
      %v208 = vld [vmem:[%s207] sm:$0x3]
      %s209 = scalar_lea.vmem %s197, 4
      %v210 = vld [vmem:[%s209] sm:$0x3]
      %v211 = vld [vmem:[%s189] sm:$0x3]
      %s212 = scalar_lea.vmem %s189, 2
      %v213 = vld [vmem:[%s212] sm:$0x3]
      %s214 = scalar_lea.vmem %s189, 4
      %v215 = vld [vmem:[%s214] sm:$0x3]
      %s216 = scalar_lea.vmem %s189, 6
      %v217 = vld [vmem:[%s216] sm:$0x3]
      %v218 = vmul.f32 %v211, %v206
      %v219 = vadd.f32 %v217, %v218
      %v220 = vmul.f32 %v213, %v208
      %v221 = vadd.f32 %v219, %v220
      %v222 = vmul.f32 %v215, %v210
      %v223 = vadd.f32 %v221, %v222
      %224 = vst [vmem:[%s205] sm:$0x3] %v223
      %s225 = scalar_lea.vmem %s189, 8
      %v226 = vld [vmem:[%s225] sm:$0x3]
      %s227 = scalar_lea.vmem %s189, 10
      %v228 = vld [vmem:[%s227] sm:$0x3]
      %s229 = scalar_lea.vmem %s189, 12
      %v230 = vld [vmem:[%s229] sm:$0x3]
      %s231 = scalar_lea.vmem %s189, 14
      %v232 = vld [vmem:[%s231] sm:$0x3]
      %v233 = vmul.f32 %v226, %v206
      %v234 = vadd.f32 %v232, %v233
      %v235 = vmul.f32 %v228, %v208
      %v236 = vadd.f32 %v234, %v235
      %v237 = vmul.f32 %v230, %v210
      %v238 = vadd.f32 %v236, %v237
      %s239 = scalar_lea.vmem %s205, 2
      %240 = vst [vmem:[%s239] sm:$0x3] %v238
      %s241 = scalar_lea.vmem %s189, 16
      %v242 = vld [vmem:[%s241] sm:$0x3]
      %s243 = scalar_lea.vmem %s189, 18
      %v244 = vld [vmem:[%s243] sm:$0x3]
      %s245 = scalar_lea.vmem %s189, 20
      %v246 = vld [vmem:[%s245] sm:$0x3]
      %s247 = scalar_lea.vmem %s189, 22
      %v248 = vld [vmem:[%s247] sm:$0x3]
      %v249 = vmul.f32 %v242, %v206
      %v250 = vadd.f32 %v248, %v249
      %v251 = vmul.f32 %v244, %v208
      %v252 = vadd.f32 %v250, %v251
      %v253 = vmul.f32 %v246, %v210
      %v254 = vadd.f32 %v252, %v253
      %s255 = scalar_lea.vmem %s205, 4
      %256 = vst [vmem:[%s255] sm:$0x3] %v254
      %p257 = scmp.lt.s32.totalorder %s17, 1
      %s258 = scalar_select %p257, %s17, 1
      %p259 = scmp.lt.s32.totalorder %s18, 0
      %s260 = scalar_select %p259, %s18, 0
      %s261 = smul.addr %s258, 3
      %s262 = sadd.s32 %s260, %s261
      %s263 = smul.addr %s262, 2
      %s264 = scalar_lea.vmem %s2, %s263
      // Predicated region
      $region29: #{apply_coeffs.1} parent=27 // pred_check
        %p265 = pneg %p101
      $region30: #{apply_coeffs.1} parent=27 // pred_check_branch
        %267 = sbr.rel (%p265) target = $region32
      $region31: #{apply_coeffs.1} parent=27 // pred_region
        _
      $region32: #{apply_coeffs.1} parent=27 // pred_fallthru
        _
    $region28: #{apply_coeffs.1} parent=5 // pred_fallthru
      _
    %p268 = scmp.le.s32.totalorder 2, %s8
    // Predicated region
    $region33: #{apply_coeffs.1} parent=5 // pred_check
      %p269 = pneg %p268
    $region34: #{apply_coeffs.1} parent=5 // pred_check_branch
      %271 = sbr.rel (%p269) target = $region36
    $region35: #{apply_coeffs.1} parent=5 // pred_region
      %s272 = ssub.s32 %s8, 2
      // Predicated region
      $region37: #{apply_coeffs.1} parent=35 // pred_check
        %p273 = pneg %p107
      $region38: #{apply_coeffs.1} parent=35 // pred_check_branch
        %275 = sbr.rel (%p273) target = $region40
      $region39: #{apply_coeffs.1} parent=35 // pred_region
        %p276 = scmp.lt.s32.totalorder %s19, 1
        %s277 = scalar_select %p276, %s19, 1
        %p278 = scmp.lt.s32.totalorder %s20, 0
        %s279 = scalar_select %p278, %s20, 0
        %s280 = smul.addr %s277, 3
        %s281 = sadd.s32 %s279, %s280
        %s282 = smul.addr %s281, 2
        %s283 = scalar_lea.vmem %s2, %s282
      $region40: #{apply_coeffs.1} parent=35 // pred_fallthru
        _
    $region36: #{apply_coeffs.1} parent=5 // pred_fallthru
      _
  $region6: #{apply_coeffs.1} parent=0 // loop_footer
    %s12 = sadd.s32 1, %s8
  $region7: #{apply_coeffs.1} parent=0 // loop_footer_branch
    %7 = sbr.rel target = $region3
  $region8: #{apply_coeffs.1} parent=0 // loop_exit
    _

</llo_original>
